<compile_context>
chip_gen: v6e
topology: v6e:2x2x1
jax: 0.10.0
libtpu: 0.0.40
codegen_flags: <defaults>
</compile_context>

<pallas_src>
import jax
import jax.numpy as jnp
from jax.experimental import pallas as pl
from jax.experimental.pallas import tpu as pltpu

_LANE = 128
_SMALL_BYPASS_ELEMS = 1 << 20        # ~1M elems: below this, let XLA fuse it.
_TARGET_BLOCK_BYTES = 4 << 20        # ~4 MiB per buffer (per perf review).
_FLOOR_BLOCK_BYTES = 1 << 20         # never shrink a tile below this to split.
_MIN_GRID_BLOCKS = 4                 # >= 2 pipelined steps per v7x TensorCore.
_VMEM_LIMIT_BYTES = 32 << 20         # covers 4 x 4 MiB buffers with headroom.


def _h_sigmoid_kernel(x_ref, o_ref):
    # Compute in f32 regardless of input dtype; cast on store.
    x = x_ref[...].astype(jnp.float32)
    # ReLU6(x + 3) / 6  ==  clamp(x + 3, 0, 6) * (1/6)
    o_ref[...] = (jnp.clip(x + 3.0, 0.0, 6.0) * (1.0 / 6.0)).astype(o_ref.dtype)


def _h_sigmoid_jnp(x):
    y = jnp.clip(x.astype(jnp.float32) + 3.0, 0.0, 6.0) * (1.0 / 6.0)
    return y.astype(x.dtype)


def _sublane_multiple(dtype) -> int:
    # Min second-to-last tile dim: 8 (f32), 16 (bf16/f16), 32 (int8/fp8).
    return max(8, 32 // jnp.dtype(dtype).itemsize)


def h_sigmoid(x: jax.Array, *, block_bytes: int = _TARGET_BLOCK_BYTES,
              force_pallas: bool = False, donate_input: bool = False) -> jax.Array:
    """Elementwise hard-sigmoid matching torch ReLU6(x+3)/6. Any layout."""
    orig_shape = x.shape
    n = x.size
    if n == 0:
        return x
    # Integer/bool inputs: keep the XLA path (kernel path is for float maps).
    if not jnp.issubdtype(x.dtype, jnp.floating):
        return _h_sigmoid_jnp(x)

    itemsize = jnp.dtype(x.dtype).itemsize
    small = (n < _SMALL_BYPASS_ELEMS) and not force_pallas

    # Pick a lane-dense 2D view.  Preferred: keep the natural trailing dim and
    # collapse only the leading dims (pure collapse -> no relayout for the
    # default row-major layout).  Fallback: flat (rows, 128) slab.
    rows = cols = None
    if (x.ndim >= 2 and x.shape[-1] % _LANE == 0
            and x.shape[-1] * itemsize <= block_bytes):
        cols = x.shape[-1]
        rows = n // cols
    elif n % _LANE == 0:
        cols = _LANE
        rows = n // _LANE

    # Ragged sizes would need an HBM pad copy (costs more than it saves for a
    # mem-bound op); small inputs are faster fused into neighboring XLA ops.
    if small or rows is None:
        return _h_sigmoid_jnp(x)

    # TODO(synk): if the caller's x carries a non-default (tiled) layout, this
    # reshape can insert a relayout copy; verify bitcast in HLO at such call
    # sites and route them through _h_sigmoid_jnp instead.
    x2d = x.reshape(rows, cols)

    sub = _sublane_multiple(x.dtype)
    bytes_per_row = cols * itemsize

    # Byte-targeted tile: ~block_bytes per buffer, rounded to sublane multiple.
    tile_rows = min(rows, max(1, block_bytes // bytes_per_row))
    if tile_rows < rows:
        tile_rows = max(sub, (tile_rows // sub) * sub)
        tile_rows = min(tile_rows, rows)

    # Target >= _MIN_GRID_BLOCKS grid steps (>= 2 per v7x TC + pipelining), but
    # never shrink a tile below the byte floor just to split the work.
    nblocks = -(-rows // tile_rows)
    if nblocks < _MIN_GRID_BLOCKS:
        cand = -(-rows // _MIN_GRID_BLOCKS)
        cand = ((cand + sub - 1) // sub) * sub
        if 0 < cand < rows and cand * bytes_per_row >= _FLOOR_BLOCK_BYTES:
            tile_rows = cand

    grid = (pl.cdiv(rows, tile_rows),)  # partial last block masked by Pallas

    out2d = pl.pallas_call(
        _h_sigmoid_kernel,
        out_shape=jax.ShapeDtypeStruct((rows, cols), x.dtype),
        grid_spec=pltpu.PrefetchScalarGridSpec(
            num_scalar_prefetch=0,
            grid=grid,
            in_specs=[pl.BlockSpec((tile_rows, cols), lambda i: (i, 0))],
            out_specs=pl.BlockSpec((tile_rows, cols), lambda i: (i, 0)),
        ),
        compiler_params=pltpu.CompilerParams(
            dimension_semantics=("parallel",),
            vmem_limit_bytes=_VMEM_LIMIT_BYTES),
        input_output_aliases=({0: 0} if donate_input else {}),
    )(x2d)

    return out2d.reshape(orig_shape)  # collapse-inverse, zero-copy


def _ref(x):
    return (jnp.clip(x.astype(jnp.float32) + 3.0, 0.0, 6.0) / 6.0).astype(x.dtype)


if __name__ == "__main__":
    key = jax.random.PRNGKey(0)
    k1, k2, k3, k4 = jax.random.split(key, 4)

    # 1) Small NCHW input consistent with the module's usage (fused jnp path).
    x_small = jax.random.normal(k1, (2, 4, 16, 16), dtype=jnp.float32) * 4.0
    y_small = jax.block_until_ready(h_sigmoid(x_small))
    assert y_small.shape == x_small.shape and y_small.dtype == x_small.dtype
    assert jnp.allclose(y_small, _ref(x_small), atol=1e-6)

    # 2) Same small shape but force the Pallas kernel (single-block grid on a
    #    lane-dense (16, 128) slab).
    y_forced = jax.block_until_ready(h_sigmoid(x_small, force_pallas=True))
    assert jnp.allclose(y_forced, _ref(x_small), atol=1e-6)

    # 3) Trailing dim = 128 -> collapse-leading-dims path; small block_bytes
    #    forces a multi-block parallel grid to exercise the pipeline.
    x_mb = jax.random.normal(k2, (2, 8, 16, 128), dtype=jnp.float32) * 4.0
    y_mb = jax.block_until_ready(
        h_sigmoid(x_mb, force_pallas=True, block_bytes=16 * 1024))
    assert y_mb.shape == x_mb.shape and y_mb.dtype == x_mb.dtype
    assert jnp.allclose(y_mb, _ref(x_mb), atol=1e-6)

    # 4) bf16 input through the kernel path (dtype-aware sublane rounding).
    x_bf = (jax.random.normal(k3, (2, 4, 16, 16), dtype=jnp.float32) * 4.0
            ).astype(jnp.bfloat16)
    y_bf = jax.block_until_ready(h_sigmoid(x_bf, force_pallas=True))
    assert y_bf.dtype == jnp.bfloat16
    assert jnp.allclose(y_bf.astype(jnp.float32),
                        _ref(x_bf).astype(jnp.float32), atol=1e-2)

    # 5) Ragged size (numel not a multiple of 128) -> jnp fallback path.
    x_rag = jax.random.normal(k4, (3, 5, 7, 11), dtype=jnp.float32) * 4.0
    y_rag = jax.block_until_ready(h_sigmoid(x_rag))
    assert jnp.allclose(y_rag, _ref(x_rag), atol=1e-6)

    print("KERNEL_OK")
</pallas_src>

<mosaic_0001>
module attributes {stable_mosaic.version = 11 : i64} {
  func.func @_h_sigmoid_kernel(%arg0: i32, %arg1: memref<16x128xf32, #tpu.memory_space<vmem>>, %arg2: memref<16x128xf32, #tpu.memory_space<vmem>>) attributes {dimension_semantics = [#tpu.dimension_semantics<parallel>], iteration_bounds = array<i64: 1>, scalar_prefetch = 0 : i64, scratch_operands = 0 : i64, tpu.core_type = #tpu.core_type<tc>, window_params = [{transform_indices = @transform_0, window_bounds = array<i64: 16, 128>}, {transform_indices = @transform_1, window_bounds = array<i64: 16, 128>}]} {
    %c0 = arith.constant 0 : index
    %c0_0 = arith.constant 0 : index
    %0 = vector.load %arg1[%c0, %c0_0] : memref<16x128xf32, #tpu.memory_space<vmem>>, vector<16x128xf32>
    %cst = arith.constant 3.000000e+00 : f32
    %1 = vector.broadcast %cst : f32 to vector<16x128xf32>
    %2 = arith.addf %0, %1 : vector<16x128xf32>
    %cst_1 = arith.constant 0.000000e+00 : f32
    %cst_2 = arith.constant 6.000000e+00 : f32
    %3 = vector.broadcast %cst_1 : f32 to vector<16x128xf32>
    %4 = arith.maximumf %3, %2 : vector<16x128xf32>
    %5 = vector.broadcast %cst_2 : f32 to vector<16x128xf32>
    %6 = arith.minimumf %5, %4 : vector<16x128xf32>
    %cst_3 = arith.constant 0.166666672 : f32
    %7 = vector.broadcast %cst_3 : f32 to vector<16x128xf32>
    %8 = arith.mulf %6, %7 : vector<16x128xf32>
    %c0_4 = arith.constant 0 : index
    %c0_5 = arith.constant 0 : index
    %9 = vector.load %arg2[%c0_4, %c0_5] : memref<16x128xf32, #tpu.memory_space<vmem>>, vector<16x128xf32>
    tpu.vector_store %arg2[%c0_4, %c0_5], %8 {strides = array<i32>} : memref<16x128xf32, #tpu.memory_space<vmem>>, vector<16x128xf32>,
    return
  }
  func.func @transform_0(%arg0: i32) -> (i32, i32) {
    %c0_i32 = arith.constant 0 : i32
    %c0_i32_0 = arith.constant 0 : i32
    return %arg0, %c0_i32 : i32, i32
  }
  func.func @transform_1(%arg0: i32) -> (i32, i32) {
    %c0_i32 = arith.constant 0 : i32
    %c0_i32_0 = arith.constant 0 : i32
    return %arg0, %c0_i32 : i32, i32
  }
}

</mosaic_0001>

<llo_original>
// kernel: tpu_custom_call.1
$region0: #{tpu_custom_call.1}
  #allocation0 [shape = 'u32[]', space=smem, size = 0x4, offset = 0x4, fixed_abs, tag = 'smem constant byte address 0x4 - core index']
  #allocation1 [shape = 'u32[144,128]{1,0:T(1,128)}', space=vmem, size = 0x12000, scoped, tag = 'internal scratch']
  %s0 = inlined_call_operand.hbm [shape: f32[16,128], index: 0, kind: input, shape index: {}]
  %s1 = inlined_call_operand.hbm [shape: f32[16,128], index: 1, kind: output, shape index: {}]
  %s2 = sld [smem:[#allocation0]]
  $region18: #{tpu_custom_call.1} parent=0
    _
  %s4 = ssub.s32 1, %s2
  %s5 = scalar_select 0, %s4, %s2
  $region1: #{tpu_custom_call.1} parent=0
    #allocation2 [shape = 'u8[8192]{0}', space=vmem, size = 0x2000, scoped, tag = 'input window, operand 0, single buffered']
    #allocation3 [shape = 's32[1]{0}', space=sflag, size = 0x4, scoped, tag = 'scoped memory for tpu_custom_call.1']
    #allocation4 [shape = 's32[1]{0}', space=sflag, size = 0x4, scoped, tag = 'scoped memory for tpu_custom_call.1']
    #allocation5 [shape = 'u8[8192]{0}', space=vmem, size = 0x2000, scoped, tag = 'output window, operand 0, single buffered']
    %6 = vsyncpa [#allocation3], 0
    %7 = vsyncpa [#allocation4], 0
    // Predicated region
    $region2: #{tpu_custom_call.1} parent=1 // pred_check
      _
    $region3: #{tpu_custom_call.1} parent=1 // pred_check_branch
      %9 = sbr.rel (0) target = $region5
    $region4: #{tpu_custom_call.1} parent=1 // pred_region
      %s11 = ssub.s32 256, 256
      %12 = vsyncadd [#allocation3], %s11
      %s13 = sshll.u32 [#allocation2], 4
      %s14 = int_to_ptr.vmem [resolvable:$true] %s13
      %19 = dma.hbm_to_vmem [thread:$0]  %s0, 256, %s14, [#allocation3], 128, 128, 8
    $region5: #{tpu_custom_call.1} parent=1 // pred_fallthru
      _
    // Predicated region
    $region6: #{tpu_custom_call.1} parent=1 // pred_check
      _
    $region7: #{tpu_custom_call.1} parent=1 // pred_check_branch
      %21 = sbr.rel (0) target = $region9
    $region8: #{tpu_custom_call.1} parent=1 // pred_region
      %22 = dma.done [#allocation3], 256
    $region9: #{tpu_custom_call.1} parent=1 // pred_fallthru
      _
    %v23 = vld [vmem:[#allocation2] sm:$0xff]
    %v24 = vld [vmem:[#allocation2 + $0x8] sm:$0xff]
    %v25 = vadd.f32 %v23, 3.0
    %v26 = vadd.f32 %v24, 3.0
    %v27 = vmax.f32 %v25, 0.0
    %v28 = vmax.f32 %v26, 0.0
    %v29 = vmin.f32 %v27, 6.0
    %v30 = vmin.f32 %v28, 6.0
    %v31 = vmul.f32 %v29, 0.16666667
    %v32 = vmul.f32 %v30, 0.16666667
    %33 = vst [vmem:[#allocation5] sm:$0xff] %v31
    %34 = vst [vmem:[#allocation5 + $0x8] sm:$0xff] %v32
    // Predicated region
    $region10: #{tpu_custom_call.1} parent=1 // pred_check
      _
    $region11: #{tpu_custom_call.1} parent=1 // pred_check_branch
      %36 = sbr.rel (0) target = $region13
    $region12: #{tpu_custom_call.1} parent=1 // pred_region
      %s38 = ssub.s32 256, 256
      %39 = vsyncadd [#allocation4], %s38
      %s40 = sshll.u32 [#allocation5], 4
      %s41 = int_to_ptr.vmem [resolvable:$true] %s40
      %46 = dma.vmem_to_hbm [thread:$0]  %s41, 256, %s1, [#allocation4], 128, 128, 8
    $region13: #{tpu_custom_call.1} parent=1 // pred_fallthru
      _
    // Predicated region
    $region14: #{tpu_custom_call.1} parent=1 // pred_check
      _
    $region15: #{tpu_custom_call.1} parent=1 // pred_check_branch
      %48 = sbr.rel (0) target = $region17
    $region16: #{tpu_custom_call.1} parent=1 // pred_region
      %49 = dma.done [#allocation4], 256
    $region17: #{tpu_custom_call.1} parent=1 // pred_fallthru
      _
    %50 = vsyncpa [#allocation3], 1
    %51 = vsyncpa [#allocation4], 1

</llo_original>
